<compile_context>
chip_gen: v7x
topology: tpu7x:2x2x1
jax: 0.10.0
libtpu: 0.0.40
codegen_flags: <defaults>
</compile_context>

<pallas_src>
import functools

import jax
import jax.numpy as jnp
from jax.experimental import pallas as pl
from jax.experimental.pallas import tpu as pltpu


# ---------------------------------------------------------------------------
# Fused kernel: MSE + in-VMEM replication pad + separable Sobel + canny terms
# ---------------------------------------------------------------------------
def _fused_kernel(p_ref, t_ref, e_ref, acc_ref, *, n_steps, steps_per_core):
    """Grid = (NCORES, steps_per_core); each valid step consumes B_TILE images.

    p_ref, t_ref, e_ref : (B_TILE, H, W) blocks (native dtype, upcast in-kernel)
    acc_ref             : (3, H, W) f32 per-core revisited accumulator
                          row 0: per-pixel sum over batch of (pred - target)^2
                          row 1: per-pixel sum of |gx| + |gy|
                          row 2: per-pixel sum of (|gx| + |gy|) * canny
    """
    core = pl.program_id(0)
    step_in_core = pl.program_id(1)

    @pl.when(step_in_core == 0)
    def _init():
        acc_ref[...] = jnp.zeros(acc_ref.shape, acc_ref.dtype)

    step = core * steps_per_core + step_in_core

    @pl.when(step < n_steps)  # mask the ragged tail of the 2-core split
    def _accumulate():
        p = p_ref[...].astype(jnp.float32)          # (BT, H, W)
        t = t_ref[...].astype(jnp.float32)
        e = e_ref[...].astype(jnp.float32)
        _, H, W = p.shape

        # ---- squared error (MSE numerator) --------------------------------
        d = p - t
        sq = d * d

        # ---- ReplicationPad2d(1) entirely in VMEM (rows, then cols) --------
        pr = jnp.concatenate([p[:, 0:1, :], p, p[:, H - 1:H, :]], axis=1)     # (BT,H+2,W)
        pp = jnp.concatenate([pr[:, :, 0:1], pr, pr[:, :, W - 1:W]], axis=2)  # (BT,H+2,W+2)

        # ---- separable Sobel: sobel_x = [1,2,1]^T x [-1,0,1]; sobel_y = transpose
        vs = pp[:, 0:H, :] + 2.0 * pp[:, 1:H + 1, :] + pp[:, 2:H + 2, :]      # (BT,H,W+2)
        gx = vs[:, :, 2:W + 2] - vs[:, :, 0:W]                                 # (BT,H,W)
        hs = pp[:, :, 0:W] + 2.0 * pp[:, :, 1:W + 1] + pp[:, :, 2:W + 2]       # (BT,H+2,W)
        gy = hs[2:H + 2, :] if False else hs[:, 2:H + 2, :] - hs[:, 0:H, :]    # (BT,H,W)

        s = jnp.abs(gx) + jnp.abs(gy)
        # canny is a nonnegative (0/1) edge map, so |g*canny| == |g|*canny.
        sc = s * e

        # Leading-axis (batch-tile) reduction only: pure vreg adds, no XLU,
        # no masked scalar stores. The cross-lane reduce happens once in the
        # wrapper on the tiny accumulator.
        acc_ref[0] += jnp.sum(sq, axis=0)
        acc_ref[1] += jnp.sum(s, axis=0)
        acc_ref[2] += jnp.sum(sc, axis=0)


# ---------------------------------------------------------------------------
# MSE-only kernel (regularizer disabled)
# ---------------------------------------------------------------------------
def _mse_kernel(p_ref, t_ref, acc_ref):
    @pl.when(pl.program_id(0) == 0)
    def _init():
        acc_ref[...] = jnp.zeros(acc_ref.shape, acc_ref.dtype)

    d = p_ref[...].astype(jnp.float32) - t_ref[...].astype(jnp.float32)  # (BT,H,W)
    acc_ref[...] += jnp.sum(d * d, axis=0)


# ---------------------------------------------------------------------------
# Wrappers
# ---------------------------------------------------------------------------
def _pick_batch_tile(n_images, h, w, itemsize, target_bytes=1 << 20):
    """Largest divisor of n_images keeping a per-array block <= target_bytes.

    ~1 MiB per array per buffer keeps total in-flight VMEM (3 double-buffered
    inputs + in-kernel temporaries + resident accumulator) well inside the
    default scoped-VMEM budget on v5e/v6e/v7x, so no vmem_limit override is
    needed.
    """
    per_image = max(1, h * w * itemsize)
    best = 1
    for d in range(1, n_images + 1):
        if n_images % d == 0 and d * per_image <= target_bytes:
            best = d
    return best


def _combined_partial_sums(predictions, targets, canny, images_per_step=None):
    """Returns (sum((p-t)^2), sum(|gx|+|gy|), sum((|gx|+|gy|)*canny))."""
    n, c, h, w = predictions.shape
    if c != 1:
        raise ValueError("gradient_loss expects single-channel depth maps")
    p = predictions.reshape(n, h, w)
    t = targets.reshape(n, h, w)
    e = canny.reshape(n, h, w)

    if images_per_step is None:
        images_per_step = _pick_batch_tile(n, h, w, p.dtype.itemsize)
    bt = max(1, min(int(images_per_step), n))
    while n % bt:                       # keep bt a divisor of n
        bt -= 1
    n_steps = n // bt
    ncores = 2 if n_steps >= 2 else 1   # expose both TCs on v7x; no-op on 1-TC chips
    spc = pl.cdiv(n_steps, ncores)

    def in_map(core, b):
        # clamp so the (at most one) masked tail step still has a legal block
        return (jnp.minimum(core * spc + b, n_steps - 1), 0, 0)

    kern = functools.partial(_fused_kernel, n_steps=n_steps, steps_per_core=spc)
    acc = pl.pallas_call(
        kern,
        out_shape=jax.ShapeDtypeStruct((ncores, 3, h, w), jnp.float32),
        grid=(ncores, spc),
        in_specs=[pl.BlockSpec((bt, h, w), in_map),
                  pl.BlockSpec((bt, h, w), in_map),
                  pl.BlockSpec((bt, h, w), in_map)],
        out_specs=pl.BlockSpec((None, 3, h, w), lambda core, b: (core, 0, 0, 0)),
        compiler_params=pltpu.CompilerParams(
            dimension_semantics=("parallel", "arbitrary")),
    )(p, t, e)
    sums = jnp.sum(acc, axis=(0, 2, 3))          # tiny final reduce in XLA
    return sums[0], sums[1], sums[2]


def _mse_mean(predictions, targets):
    n, c, h, w = predictions.shape
    m = n * c
    p = predictions.reshape(m, h, w)
    t = targets.reshape(m, h, w)
    bt = _pick_batch_tile(m, h, w, p.dtype.itemsize)
    acc = pl.pallas_call(
        _mse_kernel,
        out_shape=jax.ShapeDtypeStruct((h, w), jnp.float32),
        grid=(m // bt,),
        in_specs=[pl.BlockSpec((bt, h, w), lambda b: (b, 0, 0)),
                  pl.BlockSpec((bt, h, w), lambda b: (b, 0, 0))],
        out_specs=pl.BlockSpec((h, w), lambda b: (0, 0)),
        compiler_params=pltpu.CompilerParams(dimension_semantics=("arbitrary",)),
    )(p, t)
    return jnp.sum(acc) / float(predictions.size)


class CombinedLoss:
    """JAX/Pallas port of the PyTorch CombinedLoss (eval-mode forward)."""

    def __init__(self, canny_reg_weight, use_canny_regularizer=False):
        self.canny_reg_weight = float(canny_reg_weight)
        self.use_canny_regularizer = use_canny_regularizer

    def __call__(self, predictions, targets, canny_edges=None, images_per_step=None):
        if (self.use_canny_regularizer and canny_edges is not None
                and self.canny_reg_weight > 0):
            n, c, h, w = predictions.shape
            sq, s_sum, sc_sum = _combined_partial_sums(
                predictions, targets, canny_edges, images_per_step)
            m = float(n * c * h * w)             # numel of the gradient maps
            reconstruction_loss = sq / float(predictions.size)
            edge_loss = (s_sum - sc_sum) / m - 0.3 * (sc_sum / m)
            total_loss = reconstruction_loss + self.canny_reg_weight * edge_loss
            return total_loss, reconstruction_loss, edge_loss
        reconstruction_loss = _mse_mean(predictions, targets)
        edge_loss_val = jnp.zeros((), jnp.float32)
        return reconstruction_loss, reconstruction_loss, edge_loss_val


# ---------------------------------------------------------------------------
# Pure-JAX reference (mirrors the PyTorch code term by term)
# ---------------------------------------------------------------------------
def _reference(predictions, targets, canny, canny_reg_weight):
    p = predictions.astype(jnp.float32)
    recon = jnp.mean((p - targets.astype(jnp.float32)) ** 2)
    pp = jnp.pad(p, ((0, 0), (0, 0), (1, 1), (1, 1)), mode="edge")
    kx = jnp.array([[-1., 0., 1.], [-2., 0., 2.], [-1., 0., 1.]], jnp.float32)
    ky = jnp.array([[-1., -2., -1.], [0., 0., 0.], [1., 2., 1.]], jnp.float32)
    n, c, h, w = predictions.shape
    gx = jnp.zeros_like(p)
    gy = jnp.zeros_like(p)
    for di in range(3):
        for dj in range(3):
            win = pp[:, :, di:di + h, dj:dj + w]
            gx = gx + kx[di, dj] * win
            gy = gy + ky[di, dj] * win
    wts = 1.0 - canny
    loss = jnp.mean(jnp.abs(gx) * wts) + jnp.mean(jnp.abs(gy) * wts)
    good = jnp.mean(jnp.abs(gx * canny)) + jnp.mean(jnp.abs(gy * canny))
    edge = loss - 0.3 * good
    return recon + canny_reg_weight * edge, recon, edge


if __name__ == "__main__":
    key = jax.random.PRNGKey(0)
    k1, k2, k3 = jax.random.split(key, 3)
    N, C, H, W = 5, 1, 16, 16
    predictions = jax.nn.sigmoid(jax.random.normal(k1, (N, C, H, W), jnp.float32)) * 10.0
    targets = jax.nn.sigmoid(jax.random.normal(k2, (N, C, H, W), jnp.float32)) * 10.0
    canny_edges = (jax.random.uniform(k3, (N, C, H, W), jnp.float32) > 0.8).astype(jnp.float32)

    ref_total, ref_recon, ref_edge = _reference(predictions, targets, canny_edges, 0.1)

    crit = CombinedLoss(canny_reg_weight=0.1, use_canny_regularizer=True)

    # Default path: whole batch in one grid step (single TC, no masking).
    total, recon, edge = jax.block_until_ready(crit(predictions, targets, canny_edges))
    assert bool(jnp.allclose(recon, ref_recon, rtol=1e-4, atol=1e-5)), (recon, ref_recon)
    assert bool(jnp.allclose(edge, ref_edge, rtol=1e-4, atol=1e-5)), (edge, ref_edge)
    assert bool(jnp.allclose(total, ref_total, rtol=1e-4, atol=1e-5)), (total, ref_total)
    assert bool(jnp.isfinite(total)) and bool(jnp.isfinite(recon)) and bool(jnp.isfinite(edge))

    # Forced 1-image-per-step path: exercises the 2-way "parallel" core split
    # with an odd step count (masked tail step).
    total2, recon2, edge2 = jax.block_until_ready(
        crit(predictions, targets, canny_edges, images_per_step=1))
    assert bool(jnp.allclose(recon2, ref_recon, rtol=1e-4, atol=1e-5)), (recon2, ref_recon)
    assert bool(jnp.allclose(edge2, ref_edge, rtol=1e-4, atol=1e-5)), (edge2, ref_edge)
    assert bool(jnp.allclose(total2, ref_total, rtol=1e-4, atol=1e-5)), (total2, ref_total)

    # Regularizer OFF (plain fused MSE kernel; edge term must be exactly 0).
    crit_off = CombinedLoss(canny_reg_weight=0.0, use_canny_regularizer=False)
    t3, r3, e3 = jax.block_until_ready(crit_off(predictions, targets))
    assert bool(jnp.allclose(r3, ref_recon, rtol=1e-4, atol=1e-5)), (r3, ref_recon)
    assert bool(jnp.allclose(t3, r3))
    assert float(e3) == 0.0

    print("KERNEL_OK")
</pallas_src>

<mosaic_0001>
module attributes {stable_mosaic.version = 11 : i64} {
  func.func @_fused_kernel(%arg0: i32, %arg1: i32, %arg2: memref<5x16x16xf32, #tpu.memory_space<vmem>>, %arg3: memref<5x16x16xf32, #tpu.memory_space<vmem>>, %arg4: memref<5x16x16xf32, #tpu.memory_space<vmem>>, %arg5: memref<1x3x16x16xf32, #tpu.memory_space<vmem>>) attributes {dimension_semantics = [#tpu.dimension_semantics<parallel>, #tpu.dimension_semantics<arbitrary>], iteration_bounds = array<i64: 1, 1>, scalar_prefetch = 0 : i64, scratch_operands = 0 : i64, tpu.core_type = #tpu.core_type<tc>, window_params = [{transform_indices = @transform_0, window_bounds = array<i64: 5, 16, 16>}, {transform_indices = @transform_1, window_bounds = array<i64: 5, 16, 16>}, {transform_indices = @transform_2, window_bounds = array<i64: 5, 16, 16>}, {transform_indices = @transform_3, window_bounds = array<i64: 1, 3, 16, 16>}]} {
    %c0_i32 = arith.constant 0 : i32
    %0 = arith.cmpi eq, %arg1, %c0_i32 : i32
    %1 = arith.extui %0 : i1 to i32
    %c0_i32_0 = arith.constant 0 : i32
    %2 = arith.cmpi ne, %1, %c0_i32_0 : i32
    scf.if %2 {
      %cst = arith.constant 0.000000e+00 : f32
      %8 = vector.broadcast %cst : f32 to vector<3x16x16xf32>
      %c0 = arith.constant 0 : index
      %c0_3 = arith.constant 0 : index
      %c0_4 = arith.constant 0 : index
      %c0_5 = arith.constant 0 : index
      %9 = vector.load %arg5[%c0, %c0_3, %c0_4, %c0_5] : memref<1x3x16x16xf32, #tpu.memory_space<vmem>>, vector<1x3x16x16xf32>
      %10 = vector.shape_cast %9 : vector<1x3x16x16xf32> to vector<3x16x16xf32>
      %11 = vector.shape_cast %8 : vector<3x16x16xf32> to vector<1x3x16x16xf32>
      tpu.vector_store %arg5[%c0, %c0_3, %c0_4, %c0_5], %11 {strides = array<i32>} : memref<1x3x16x16xf32, #tpu.memory_space<vmem>>, vector<1x3x16x16xf32>,
    } else {
    }
    %c1_i32 = arith.constant 1 : i32
    %3 = arith.muli %arg0, %c1_i32 : i32
    %4 = arith.addi %3, %arg1 : i32
    %c1_i32_1 = arith.constant 1 : i32
    %5 = arith.cmpi slt, %4, %c1_i32_1 : i32
    %6 = arith.extui %5 : i1 to i32
    %c0_i32_2 = arith.constant 0 : i32
    %7 = arith.cmpi ne, %6, %c0_i32_2 : i32
    scf.if %7 {
      %c0 = arith.constant 0 : index
      %c0_3 = arith.constant 0 : index
      %c0_4 = arith.constant 0 : index
      %8 = vector.load %arg2[%c0, %c0_3, %c0_4] : memref<5x16x16xf32, #tpu.memory_space<vmem>>, vector<5x16x16xf32>
      %c0_5 = arith.constant 0 : index
      %c0_6 = arith.constant 0 : index
      %c0_7 = arith.constant 0 : index
      %9 = vector.load %arg3[%c0_5, %c0_6, %c0_7] : memref<5x16x16xf32, #tpu.memory_space<vmem>>, vector<5x16x16xf32>
      %c0_8 = arith.constant 0 : index
      %c0_9 = arith.constant 0 : index
      %c0_10 = arith.constant 0 : index
      %10 = vector.load %arg4[%c0_8, %c0_9, %c0_10] : memref<5x16x16xf32, #tpu.memory_space<vmem>>, vector<5x16x16xf32>
      %11 = arith.subf %8, %9 : vector<5x16x16xf32>
      %12 = arith.mulf %11, %11 : vector<5x16x16xf32>
      %13 = vector.extract_strided_slice %8 {offsets = [0, 0, 0], sizes = [5, 1, 16], strides = [1, 1, 1]} : vector<5x16x16xf32> to vector<5x1x16xf32>
      %14 = vector.extract_strided_slice %8 {offsets = [0, 15, 0], sizes = [5, 1, 16], strides = [1, 1, 1]} : vector<5x16x16xf32> to vector<5x1x16xf32>
      %15 = tpu.concatenate %13, %8, %14 in 1 : vector<5x1x16xf32>, vector<5x16x16xf32>, vector<5x1x16xf32> -> vector<5x18x16xf32>
      %16 = vector.extract_strided_slice %15 {offsets = [0, 0, 0], sizes = [5, 18, 1], strides = [1, 1, 1]} : vector<5x18x16xf32> to vector<5x18x1xf32>
      %17 = vector.extract_strided_slice %15 {offsets = [0, 0, 15], sizes = [5, 18, 1], strides = [1, 1, 1]} : vector<5x18x16xf32> to vector<5x18x1xf32>
      %18 = tpu.concatenate %16, %15, %17 in 2 : vector<5x18x1xf32>, vector<5x18x16xf32>, vector<5x18x1xf32> -> vector<5x18x18xf32>
      %19 = vector.extract_strided_slice %18 {offsets = [0, 0, 0], sizes = [5, 16, 18], strides = [1, 1, 1]} : vector<5x18x18xf32> to vector<5x16x18xf32>
      %20 = vector.extract_strided_slice %18 {offsets = [0, 1, 0], sizes = [5, 16, 18], strides = [1, 1, 1]} : vector<5x18x18xf32> to vector<5x16x18xf32>
      %cst = arith.constant 2.000000e+00 : f32
      %21 = vector.broadcast %cst : f32 to vector<5x16x18xf32>
      %22 = arith.mulf %21, %20 : vector<5x16x18xf32>
      %23 = arith.addf %19, %22 : vector<5x16x18xf32>
      %24 = vector.extract_strided_slice %18 {offsets = [0, 2, 0], sizes = [5, 16, 18], strides = [1, 1, 1]} : vector<5x18x18xf32> to vector<5x16x18xf32>
      %25 = arith.addf %23, %24 : vector<5x16x18xf32>
      %26 = vector.extract_strided_slice %25 {offsets = [0, 0, 2], sizes = [5, 16, 16], strides = [1, 1, 1]} : vector<5x16x18xf32> to vector<5x16x16xf32>
      %27 = vector.extract_strided_slice %25 {offsets = [0, 0, 0], sizes = [5, 16, 16], strides = [1, 1, 1]} : vector<5x16x18xf32> to vector<5x16x16xf32>
      %28 = arith.subf %26, %27 : vector<5x16x16xf32>
      %29 = vector.extract_strided_slice %18 {offsets = [0, 0, 0], sizes = [5, 18, 16], strides = [1, 1, 1]} : vector<5x18x18xf32> to vector<5x18x16xf32>
      %30 = vector.extract_strided_slice %18 {offsets = [0, 0, 1], sizes = [5, 18, 16], strides = [1, 1, 1]} : vector<5x18x18xf32> to vector<5x18x16xf32>
      %cst_11 = arith.constant 2.000000e+00 : f32
      %31 = vector.broadcast %cst_11 : f32 to vector<5x18x16xf32>
      %32 = arith.mulf %31, %30 : vector<5x18x16xf32>
      %33 = arith.addf %29, %32 : vector<5x18x16xf32>
      %34 = vector.extract_strided_slice %18 {offsets = [0, 0, 2], sizes = [5, 18, 16], strides = [1, 1, 1]} : vector<5x18x18xf32> to vector<5x18x16xf32>
      %35 = arith.addf %33, %34 : vector<5x18x16xf32>
      %36 = vector.extract_strided_slice %35 {offsets = [0, 2, 0], sizes = [5, 16, 16], strides = [1, 1, 1]} : vector<5x18x16xf32> to vector<5x16x16xf32>
      %37 = vector.extract_strided_slice %35 {offsets = [0, 0, 0], sizes = [5, 16, 16], strides = [1, 1, 1]} : vector<5x18x16xf32> to vector<5x16x16xf32>
      %38 = arith.subf %36, %37 : vector<5x16x16xf32>
      %39 = math.absf %28 : vector<5x16x16xf32>
      %40 = math.absf %38 : vector<5x16x16xf32>
      %41 = arith.addf %39, %40 : vector<5x16x16xf32>
      %42 = arith.mulf %41, %10 : vector<5x16x16xf32>
      %c0_12 = arith.constant 0 : index
      %c0_13 = arith.constant 0 : index
      %c0_14 = arith.constant 0 : index
      %c0_15 = arith.constant 0 : index
      %43 = vector.load %arg5[%c0_12, %c0_13, %c0_14, %c0_15] : memref<1x3x16x16xf32, #tpu.memory_space<vmem>>, vector<1x1x16x16xf32>
      %44 = vector.shape_cast %43 : vector<1x1x16x16xf32> to vector<16x16xf32>
      %cst_16 = arith.constant dense<0.000000e+00> : vector<16x16xf32>
      %45 = vector.multi_reduction <add>, %12, %cst_16 [0] : vector<5x16x16xf32> to vector<16x16xf32>
      %46 = arith.addf %44, %45 : vector<16x16xf32>
      %c0_17 = arith.constant 0 : index
      %c0_18 = arith.constant 0 : index
      %c0_19 = arith.constant 0 : index
      %c0_20 = arith.constant 0 : index
      %47 = vector.load %arg5[%c0_17, %c0_18, %c0_19, %c0_20] : memref<1x3x16x16xf32, #tpu.memory_space<vmem>>, vector<1x1x16x16xf32>
      %48 = vector.shape_cast %47 : vector<1x1x16x16xf32> to vector<16x16xf32>
      %49 = vector.shape_cast %46 : vector<16x16xf32> to vector<1x1x16x16xf32>
      tpu.vector_store %arg5[%c0_17, %c0_18, %c0_19, %c0_20], %49 {strides = array<i32>} : memref<1x3x16x16xf32, #tpu.memory_space<vmem>>, vector<1x1x16x16xf32>,
      %c0_21 = arith.constant 0 : index
      %c1 = arith.constant 1 : index
      %c0_22 = arith.constant 0 : index
      %c0_23 = arith.constant 0 : index
      %50 = vector.load %arg5[%c0_21, %c1, %c0_22, %c0_23] : memref<1x3x16x16xf32, #tpu.memory_space<vmem>>, vector<1x1x16x16xf32>
      %51 = vector.shape_cast %50 : vector<1x1x16x16xf32> to vector<16x16xf32>
      %cst_24 = arith.constant dense<0.000000e+00> : vector<16x16xf32>
      %52 = vector.multi_reduction <add>, %41, %cst_24 [0] : vector<5x16x16xf32> to vector<16x16xf32>
      %53 = arith.addf %51, %52 : vector<16x16xf32>
      %c0_25 = arith.constant 0 : index
      %c1_26 = arith.constant 1 : index
      %c0_27 = arith.constant 0 : index
      %c0_28 = arith.constant 0 : index
      %54 = vector.load %arg5[%c0_25, %c1_26, %c0_27, %c0_28] : memref<1x3x16x16xf32, #tpu.memory_space<vmem>>, vector<1x1x16x16xf32>
      %55 = vector.shape_cast %54 : vector<1x1x16x16xf32> to vector<16x16xf32>
      %56 = vector.shape_cast %53 : vector<16x16xf32> to vector<1x1x16x16xf32>
      tpu.vector_store %arg5[%c0_25, %c1_26, %c0_27, %c0_28], %56 {strides = array<i32>} : memref<1x3x16x16xf32, #tpu.memory_space<vmem>>, vector<1x1x16x16xf32>,
      %c0_29 = arith.constant 0 : index
      %c2 = arith.constant 2 : index
      %c0_30 = arith.constant 0 : index
      %c0_31 = arith.constant 0 : index
      %57 = vector.load %arg5[%c0_29, %c2, %c0_30, %c0_31] : memref<1x3x16x16xf32, #tpu.memory_space<vmem>>, vector<1x1x16x16xf32>
      %58 = vector.shape_cast %57 : vector<1x1x16x16xf32> to vector<16x16xf32>
      %cst_32 = arith.constant dense<0.000000e+00> : vector<16x16xf32>
      %59 = vector.multi_reduction <add>, %42, %cst_32 [0] : vector<5x16x16xf32> to vector<16x16xf32>
      %60 = arith.addf %58, %59 : vector<16x16xf32>
      %c0_33 = arith.constant 0 : index
      %c2_34 = arith.constant 2 : index
      %c0_35 = arith.constant 0 : index
      %c0_36 = arith.constant 0 : index
      %61 = vector.load %arg5[%c0_33, %c2_34, %c0_35, %c0_36] : memref<1x3x16x16xf32, #tpu.memory_space<vmem>>, vector<1x1x16x16xf32>
      %62 = vector.shape_cast %61 : vector<1x1x16x16xf32> to vector<16x16xf32>
      %63 = vector.shape_cast %60 : vector<16x16xf32> to vector<1x1x16x16xf32>
      tpu.vector_store %arg5[%c0_33, %c2_34, %c0_35, %c0_36], %63 {strides = array<i32>} : memref<1x3x16x16xf32, #tpu.memory_space<vmem>>, vector<1x1x16x16xf32>,
    } else {
    }
    return
  }
  func.func @transform_0(%arg0: i32, %arg1: i32) -> (i32, i32, i32) {
    %c1_i32 = arith.constant 1 : i32
    %0 = arith.muli %arg0, %c1_i32 : i32
    %1 = arith.addi %0, %arg1 : i32
    %c0_i32 = arith.constant 0 : i32
    %2 = arith.minsi %1, %c0_i32 : i32
    %c0_i32_0 = arith.constant 0 : i32
    %c0_i32_1 = arith.constant 0 : i32
    %c0_i32_2 = arith.constant 0 : i32
    return %2, %c0_i32_0, %c0_i32_1 : i32, i32, i32
  }
  func.func @transform_1(%arg0: i32, %arg1: i32) -> (i32, i32, i32) {
    %c1_i32 = arith.constant 1 : i32
    %0 = arith.muli %arg0, %c1_i32 : i32
    %1 = arith.addi %0, %arg1 : i32
    %c0_i32 = arith.constant 0 : i32
    %2 = arith.minsi %1, %c0_i32 : i32
    %c0_i32_0 = arith.constant 0 : i32
    %c0_i32_1 = arith.constant 0 : i32
    %c0_i32_2 = arith.constant 0 : i32
    return %2, %c0_i32_0, %c0_i32_1 : i32, i32, i32
  }
  func.func @transform_2(%arg0: i32, %arg1: i32) -> (i32, i32, i32) {
    %c1_i32 = arith.constant 1 : i32
    %0 = arith.muli %arg0, %c1_i32 : i32
    %1 = arith.addi %0, %arg1 : i32
    %c0_i32 = arith.constant 0 : i32
    %2 = arith.minsi %1, %c0_i32 : i32
    %c0_i32_0 = arith.constant 0 : i32
    %c0_i32_1 = arith.constant 0 : i32
    %c0_i32_2 = arith.constant 0 : i32
    return %2, %c0_i32_0, %c0_i32_1 : i32, i32, i32
  }
  func.func @transform_3(%arg0: i32, %arg1: i32) -> (i32, i32, i32, i32) {
    %c0_i32 = arith.constant 0 : i32
    %c0_i32_0 = arith.constant 0 : i32
    %c0_i32_1 = arith.constant 0 : i32
    %c0_i32_2 = arith.constant 0 : i32
    return %arg0, %c0_i32, %c0_i32_0, %c0_i32_1 : i32, i32, i32, i32
  }
}

</mosaic_0001>

<llo_original>
// kernel: tpu_custom_call.1
$region0: #{tpu_custom_call.1}
  #allocation0 [shape = 'u32[]', space=smem, size = 0x4, offset = 0x4, fixed_abs, tag = 'smem constant byte address 0x4 - core index']
  #allocation1 [shape = 'u32[144,128]{1,0:T(1,128)}', space=vmem, size = 0x12000, scoped, tag = 'internal scratch']
  %s0 = inlined_call_operand.hbm [shape: f32[5,16,16], index: 0, kind: input, shape index: {}]
  %s1 = inlined_call_operand.hbm [shape: f32[5,16,16], index: 1, kind: input, shape index: {}]
  %s2 = inlined_call_operand.hbm [shape: f32[5,16,16], index: 2, kind: input, shape index: {}]
  %s3 = inlined_call_operand.hbm [shape: f32[1,3,16,16], index: 3, kind: output, shape index: {}]
  %s4 = sld [smem:[#allocation0]]
  $region42: #{tpu_custom_call.1} parent=0
    _
  %s6 = ssub.s32 1, %s4
  %s7 = scalar_select 0, %s6, %s4
  $region1: #{tpu_custom_call.1} parent=0
    #allocation2 [shape = 'u8[40960]{0}', space=vmem, size = 0xa000, scoped, tag = 'input window, operand 0, single buffered']
    #allocation3 [shape = 's32[1]{0}', space=sflag, size = 0x4, scoped, tag = 'scoped memory for tpu_custom_call.1']
    #allocation4 [shape = 's32[1]{0}', space=sflag, size = 0x4, scoped, tag = 'scoped memory for tpu_custom_call.1']
    #allocation5 [shape = 'u8[40960]{0}', space=vmem, size = 0xa000, scoped, tag = 'input window, operand 1, single buffered']
    #allocation6 [shape = 's32[1]{0}', space=sflag, size = 0x4, scoped, tag = 'scoped memory for tpu_custom_call.1']
    #allocation7 [shape = 'u8[40960]{0}', space=vmem, size = 0xa000, scoped, tag = 'input window, operand 2, single buffered']
    #allocation8 [shape = 'u8[24576]{0}', space=vmem, size = 0x6000, scoped, tag = 'output window, operand 0, single buffered']
    %8 = vsyncpa [#allocation3], 0
    %9 = vsyncpa [#allocation6], 0
    %10 = vsyncpa [#allocation4], 0
    // Predicated region
    $region2: #{tpu_custom_call.1} parent=1 // pred_check
      _
    $region3: #{tpu_custom_call.1} parent=1 // pred_check_branch
      %12 = sbr.rel (0) target = $region5
    $region4: #{tpu_custom_call.1} parent=1 // pred_region
      %s13 = sadd.s32 0, 0
      %p14 = scmp.lt.s32.totalorder %s13, 0
      %s15 = scalar_select %p14, %s13, 0
      %s16 = smul.u32 5, %s15
      %s18 = ssub.s32 1280, 1280
      %19 = vsyncadd [#allocation3], %s18
      %s20 = smul.addr %s16, 2
      %s21 = smul.addr %s20, 128
      %s22 = scalar_lea.hbm %s0, %s21
      %s23 = sshll.u32 [#allocation2], 4
      %s24 = int_to_ptr.vmem [resolvable:$true] %s23
      %29 = dma.hbm_to_vmem [thread:$0]  %s22, 1280, %s24, [#allocation3], 128, 128, 8
    $region5: #{tpu_custom_call.1} parent=1 // pred_fallthru
      _
    // Predicated region
    $region6: #{tpu_custom_call.1} parent=1 // pred_check
      _
    $region7: #{tpu_custom_call.1} parent=1 // pred_check_branch
      %31 = sbr.rel (0) target = $region9
    $region8: #{tpu_custom_call.1} parent=1 // pred_region
      %s32 = sadd.s32 0, 0
      %p33 = scmp.lt.s32.totalorder %s32, 0
      %s34 = scalar_select %p33, %s32, 0
      %s35 = smul.u32 5, %s34
      %s37 = ssub.s32 1280, 1280
      %38 = vsyncadd [#allocation6], %s37
      %s39 = smul.addr %s35, 2
      %s40 = smul.addr %s39, 128
      %s41 = scalar_lea.hbm %s1, %s40
      %s42 = sshll.u32 [#allocation5], 4
      %s43 = int_to_ptr.vmem [resolvable:$true] %s42
      %48 = dma.hbm_to_vmem [thread:$0]  %s41, 1280, %s43, [#allocation6], 128, 128, 8
    $region9: #{tpu_custom_call.1} parent=1 // pred_fallthru
      _
    // Predicated region
    $region10: #{tpu_custom_call.1} parent=1 // pred_check
      _
    $region11: #{tpu_custom_call.1} parent=1 // pred_check_branch
      %50 = sbr.rel (0) target = $region13
    $region12: #{tpu_custom_call.1} parent=1 // pred_region
      %s51 = sadd.s32 0, 0
      %p52 = scmp.lt.s32.totalorder %s51, 0
      %s53 = scalar_select %p52, %s51, 0
      %s54 = smul.u32 5, %s53
      %s56 = ssub.s32 1280, 1280
      %57 = vsyncadd [#allocation6], %s56
      %s58 = smul.addr %s54, 2
      %s59 = smul.addr %s58, 128
      %s60 = scalar_lea.hbm %s2, %s59
      %s61 = sshll.u32 [#allocation7], 4
      %s62 = int_to_ptr.vmem [resolvable:$true] %s61
      %67 = dma.hbm_to_vmem [thread:$0]  %s60, 1280, %s62, [#allocation6], 128, 128, 8
    $region13: #{tpu_custom_call.1} parent=1 // pred_fallthru
      _
    // Predicated region
    $region14: #{tpu_custom_call.1} parent=1 // pred_check
      _
    $region15: #{tpu_custom_call.1} parent=1 // pred_check_branch
      %69 = sbr.rel (0) target = $region17
    $region16: #{tpu_custom_call.1} parent=1 // pred_region
      %70 = dma.done [#allocation3], 1280
    $region17: #{tpu_custom_call.1} parent=1 // pred_fallthru
      _
    // Predicated region
    $region18: #{tpu_custom_call.1} parent=1 // pred_check
      _
    $region19: #{tpu_custom_call.1} parent=1 // pred_check_branch
      %72 = sbr.rel (0) target = $region21
    $region20: #{tpu_custom_call.1} parent=1 // pred_region
      %73 = dma.done [#allocation6], 1280
    $region21: #{tpu_custom_call.1} parent=1 // pred_fallthru
      _
    // Predicated region
    $region22: #{tpu_custom_call.1} parent=1 // pred_check
      _
    $region23: #{tpu_custom_call.1} parent=1 // pred_check_branch
      %75 = sbr.rel (0) target = $region25
    $region24: #{tpu_custom_call.1} parent=1 // pred_region
      %76 = dma.done [#allocation6], 1280
    $region25: #{tpu_custom_call.1} parent=1 // pred_fallthru
      _
    %s77 = sadd.s32 0, 0
    %p78 = scmp.lt.s32.totalorder %s77, 0
    %s79 = scalar_select %p78, %s77, 0
    %s80 = smul.u32 5, %s79
    %s81 = sadd.s32 0, 0
    %p82 = scmp.lt.s32.totalorder %s81, 0
    %s83 = scalar_select %p82, %s81, 0
    %s84 = smul.u32 5, %s83
    %s85 = sadd.s32 0, 0
    %p86 = scmp.lt.s32.totalorder %s85, 0
    %s87 = scalar_select %p86, %s85, 0
    %s88 = smul.u32 5, %s87
    %p89 = scmp.eq.s32.totalorder 0, 0
    // Predicated region
    $region26: #{tpu_custom_call.1} parent=1 // pred_check
      %p90 = pneg %p89
    $region27: #{tpu_custom_call.1} parent=1 // pred_check_branch
      %92 = sbr.rel (%p90) target = $region29
    $region28: #{tpu_custom_call.1} parent=1 // pred_region
      %vm93 = vcmask 130048
      %94 = vst.msk [vmem:[#allocation8] sm:$0xff] %vm93, 0.0
      %95 = vst.msk [vmem:[#allocation8 + $0x8] sm:$0xff] %vm93, 0.0
      %96 = vst.msk [vmem:[#allocation8 + $0x10] sm:$0xff] %vm93, 0.0
      %97 = vst.msk [vmem:[#allocation8 + $0x18] sm:$0xff] %vm93, 0.0
      %98 = vst.msk [vmem:[#allocation8 + $0x20] sm:$0xff] %vm93, 0.0
      %99 = vst.msk [vmem:[#allocation8 + $0x28] sm:$0xff] %vm93, 0.0
    $region29: #{tpu_custom_call.1} parent=1 // pred_fallthru
      _
    %s100 = sadd.s32 0, 0
    %p101 = scmp.lt.s32.totalorder %s100, 1
    // Predicated region
    $region30: #{tpu_custom_call.1} parent=1 // pred_check
      %p102 = pneg %p101
    $region31: #{tpu_custom_call.1} parent=1 // pred_check_branch
      %104 = sbr.rel (%p102) target = $region33
    $region32: #{tpu_custom_call.1} parent=1 // pred_region
      %v105 = vld [vmem:[#allocation2] sm:$0xff]
      %v106 = vld [vmem:[#allocation2 + $0x8] sm:$0xff]
      %v107 = vld [vmem:[#allocation2 + $0x10] sm:$0xff]
      %v108 = vld [vmem:[#allocation2 + $0x18] sm:$0xff]
      %v109 = vld [vmem:[#allocation2 + $0x20] sm:$0xff]
      %v110 = vld [vmem:[#allocation2 + $0x28] sm:$0xff]
      %v111 = vld [vmem:[#allocation2 + $0x30] sm:$0xff]
      %v112 = vld [vmem:[#allocation2 + $0x38] sm:$0xff]
      %v113 = vld [vmem:[#allocation2 + $0x40] sm:$0xff]
      %v114 = vld [vmem:[#allocation2 + $0x48] sm:$0xff]
      %v115 = vld [vmem:[#allocation5] sm:$0xff]
      %v116 = vld [vmem:[#allocation5 + $0x8] sm:$0xff]
      %v117 = vld [vmem:[#allocation5 + $0x10] sm:$0xff]
      %v118 = vld [vmem:[#allocation5 + $0x18] sm:$0xff]
      %v119 = vld [vmem:[#allocation5 + $0x20] sm:$0xff]
      %v120 = vld [vmem:[#allocation5 + $0x28] sm:$0xff]
      %v121 = vld [vmem:[#allocation5 + $0x30] sm:$0xff]
      %v122 = vld [vmem:[#allocation5 + $0x38] sm:$0xff]
      %v123 = vld [vmem:[#allocation5 + $0x40] sm:$0xff]
      %v124 = vld [vmem:[#allocation5 + $0x48] sm:$0xff]
      %v125 = vld [vmem:[#allocation7] sm:$0xff]
      %v126 = vld [vmem:[#allocation7 + $0x8] sm:$0xff]
      %v127 = vld [vmem:[#allocation7 + $0x10] sm:$0xff]
      %v128 = vld [vmem:[#allocation7 + $0x18] sm:$0xff]
      %v129 = vld [vmem:[#allocation7 + $0x20] sm:$0xff]
      %v130 = vld [vmem:[#allocation7 + $0x28] sm:$0xff]
      %v131 = vld [vmem:[#allocation7 + $0x30] sm:$0xff]
      %v132 = vld [vmem:[#allocation7 + $0x38] sm:$0xff]
      %v133 = vld [vmem:[#allocation7 + $0x40] sm:$0xff]
      %v134 = vld [vmem:[#allocation7 + $0x48] sm:$0xff]
      %v135 = vsub.f32 %v105, %v115
      %v136 = vsub.f32 %v106, %v116
      %v137 = vsub.f32 %v107, %v117
      %v138 = vsub.f32 %v108, %v118
      %v139 = vsub.f32 %v109, %v119
      %v140 = vsub.f32 %v110, %v120
      %v141 = vsub.f32 %v111, %v121
      %v142 = vsub.f32 %v112, %v122
      %v143 = vsub.f32 %v113, %v123
      %v144 = vsub.f32 %v114, %v124
      %v145 = vmul.f32 %v135, %v135
      %v146 = vmul.f32 %v136, %v136
      %v147 = vmul.f32 %v137, %v137
      %v148 = vmul.f32 %v138, %v138
      %v149 = vmul.f32 %v139, %v139
      %v150 = vmul.f32 %v140, %v140
      %v151 = vmul.f32 %v141, %v141
      %v152 = vmul.f32 %v142, %v142
      %v153 = vmul.f32 %v143, %v143
      %v154 = vmul.f32 %v144, %v144
      %vm165 = vcmask 1040384
      %v166 = vrot.slane %v105, 7
      %v167 = vrot.slane %v106, 7
      %v168 = vsel %vm165, %v166, %v167
      %v169 = vrot.slane %v107, 7
      %v170 = vrot.slane %v108, 7
      %v171 = vsel %vm165, %v169, %v170
      %v172 = vrot.slane %v109, 7
      %v173 = vrot.slane %v110, 7
      %v174 = vsel %vm165, %v172, %v173
      %v175 = vrot.slane %v111, 7
      %v176 = vrot.slane %v112, 7
      %v177 = vsel %vm165, %v175, %v176
      %v178 = vrot.slane %v113, 7
      %v179 = vrot.slane %v114, 7
      %v180 = vsel %vm165, %v178, %v179
      %v196 = vrot.slane %v106, 6
      %v197 = vrot.slane %v108, 6
      %v198 = vrot.slane %v110, 6
      %v199 = vrot.slane %v112, 6
      %v200 = vrot.slane %v114, 6
      %v206 = vsel %vm165, %v105, %v166
      %v207 = vsel %vm165, %v107, %v169
      %v208 = vsel %vm165, %v109, %v172
      %v209 = vsel %vm165, %v111, %v175
      %v210 = vsel %vm165, %v113, %v178
      %v211 = vsel %vm165, %v167, %v196
      %v212 = vsel %vm165, %v170, %v197
      %v213 = vsel %vm165, %v173, %v198
      %v214 = vsel %vm165, %v176, %v199
      %v215 = vsel %vm165, %v179, %v200
      %226 = vrot.lane.b32.xlu0 %v206, 1
      %v227 = vpop.permute.xlu0 %226
      %228 = vrot.lane.b32.xlu0 %v168, 1
      %v229 = vpop.permute.xlu0 %228
      %230 = vrot.lane.b32.xlu0 %v211, 1
      %v231 = vpop.permute.xlu0 %230
      %232 = vrot.lane.b32.xlu0 %v207, 1
      %v233 = vpop.permute.xlu0 %232
      %234 = vrot.lane.b32.xlu0 %v171, 1
      %v235 = vpop.permute.xlu0 %234
      %236 = vrot.lane.b32.xlu0 %v212, 1
      %v237 = vpop.permute.xlu0 %236
      %238 = vrot.lane.b32.xlu0 %v208, 1
      %v239 = vpop.permute.xlu0 %238
      %240 = vrot.lane.b32.xlu0 %v174, 1
      %v241 = vpop.permute.xlu0 %240
      %242 = vrot.lane.b32.xlu0 %v213, 1
      %v243 = vpop.permute.xlu0 %242
      %244 = vrot.lane.b32.xlu0 %v209, 1
      %v245 = vpop.permute.xlu0 %244
      %246 = vrot.lane.b32.xlu0 %v177, 1
      %v247 = vpop.permute.xlu0 %246
      %248 = vrot.lane.b32.xlu0 %v214, 1
      %v249 = vpop.permute.xlu0 %248
      %250 = vrot.lane.b32.xlu0 %v210, 1
      %v251 = vpop.permute.xlu0 %250
      %252 = vrot.lane.b32.xlu0 %v180, 1
      %v253 = vpop.permute.xlu0 %252
      %254 = vrot.lane.b32.xlu0 %v215, 1
      %v255 = vpop.permute.xlu0 %254
      %271 = vrot.lane.b32.xlu0 %v206, 2
      %v272 = vpop.permute.xlu0 %271
      %273 = vrot.lane.b32.xlu0 %v168, 2
      %v274 = vpop.permute.xlu0 %273
      %275 = vrot.lane.b32.xlu0 %v211, 2
      %v276 = vpop.permute.xlu0 %275
      %277 = vrot.lane.b32.xlu0 %v207, 2
      %v278 = vpop.permute.xlu0 %277
      %279 = vrot.lane.b32.xlu0 %v171, 2
      %v280 = vpop.permute.xlu0 %279
      %281 = vrot.lane.b32.xlu0 %v212, 2
      %v282 = vpop.permute.xlu0 %281
      %283 = vrot.lane.b32.xlu0 %v208, 2
      %v284 = vpop.permute.xlu0 %283
      %285 = vrot.lane.b32.xlu0 %v174, 2
      %v286 = vpop.permute.xlu0 %285
      %287 = vrot.lane.b32.xlu0 %v213, 2
      %v288 = vpop.permute.xlu0 %287
      %289 = vrot.lane.b32.xlu0 %v209, 2
      %v290 = vpop.permute.xlu0 %289
      %291 = vrot.lane.b32.xlu0 %v177, 2
      %v292 = vpop.permute.xlu0 %291
      %293 = vrot.lane.b32.xlu0 %v214, 2
      %v294 = vpop.permute.xlu0 %293
      %295 = vrot.lane.b32.xlu0 %v210, 2
      %v296 = vpop.permute.xlu0 %295
      %297 = vrot.lane.b32.xlu0 %v180, 2
      %v298 = vpop.permute.xlu0 %297
      %299 = vrot.lane.b32.xlu0 %v215, 2
      %v300 = vpop.permute.xlu0 %299
      %vm316 = vcmask 7168
      %v317 = vsel %vm316, %v206, %v227
      %v318 = vsel %vm316, %v168, %v229
      %v319 = vsel %vm316, %v211, %v231
      %v320 = vsel %vm316, %v207, %v233
      %v321 = vsel %vm316, %v171, %v235
      %v322 = vsel %vm316, %v212, %v237
      %v323 = vsel %vm316, %v208, %v239
      %v324 = vsel %vm316, %v174, %v241
      %v325 = vsel %vm316, %v213, %v243
      %v326 = vsel %vm316, %v209, %v245
      %v327 = vsel %vm316, %v177, %v247
      %v328 = vsel %vm316, %v214, %v249
      %v329 = vsel %vm316, %v210, %v251
      %v330 = vsel %vm316, %v180, %v253
      %v331 = vsel %vm316, %v215, %v255
      %vm332 = vcmask 138240
      %v333 = vsel %vm332, %v317, %v272
      %v334 = vsel %vm332, %v318, %v274
      %v335 = vsel %vm332, %v319, %v276
      %v336 = vsel %vm332, %v320, %v278
      %v337 = vsel %vm332, %v321, %v280
      %v338 = vsel %vm332, %v322, %v282
      %v339 = vsel %vm332, %v323, %v284
      %v340 = vsel %vm332, %v324, %v286
      %v341 = vsel %vm332, %v325, %v288
      %v342 = vsel %vm332, %v326, %v290
      %v343 = vsel %vm332, %v327, %v292
      %v344 = vsel %vm332, %v328, %v294
      %v345 = vsel %vm332, %v329, %v296
      %v346 = vsel %vm332, %v330, %v298
      %v347 = vsel %vm332, %v331, %v300
      %v348 = vmul.f32 %v333, 2.0
      %v349 = vmul.f32 %v334, 2.0
      %v350 = vmul.f32 %v335, 2.0
      %v351 = vmul.f32 %v336, 2.0
      %v352 = vmul.f32 %v337, 2.0
      %v353 = vmul.f32 %v338, 2.0
      %v354 = vmul.f32 %v339, 2.0
      %v355 = vmul.f32 %v340, 2.0
      %v356 = vmul.f32 %v341, 2.0
      %v357 = vmul.f32 %v342, 2.0
      %v358 = vmul.f32 %v343, 2.0
      %v359 = vmul.f32 %v344, 2.0
      %v360 = vmul.f32 %v345, 2.0
      %v361 = vmul.f32 %v346, 2.0
      %v362 = vmul.f32 %v347, 2.0
      %vm378 = vcmask 1046528
      %v379 = vrot.slane %v348, 1
      %v380 = vrot.slane %v349, 1
      %v381 = vsel %vm378, %v379, %v380
      %v382 = vrot.slane %v350, 1
      %v383 = vsel %vm378, %v380, %v382
      %v384 = vrot.slane %v351, 1
      %v385 = vrot.slane %v352, 1
      %v386 = vsel %vm378, %v384, %v385
      %v387 = vrot.slane %v353, 1
      %v388 = vsel %vm378, %v385, %v387
      %v389 = vrot.slane %v354, 1
      %v390 = vrot.slane %v355, 1
      %v391 = vsel %vm378, %v389, %v390
      %v392 = vrot.slane %v356, 1
      %v393 = vsel %vm378, %v390, %v392
      %v394 = vrot.slane %v357, 1
      %v395 = vrot.slane %v358, 1
      %v396 = vsel %vm378, %v394, %v395
      %v397 = vrot.slane %v359, 1
      %v398 = vsel %vm378, %v395, %v397
      %v399 = vrot.slane %v360, 1
      %v400 = vrot.slane %v361, 1
      %v401 = vsel %vm378, %v399, %v400
      %v402 = vrot.slane %v362, 1
      %v403 = vsel %vm378, %v400, %v402
      %v414 = vadd.f32 %v333, %v381
      %v415 = vadd.f32 %v334, %v383
      %v416 = vadd.f32 %v336, %v386
      %v417 = vadd.f32 %v337, %v388
      %v418 = vadd.f32 %v339, %v391
      %v419 = vadd.f32 %v340, %v393
      %v420 = vadd.f32 %v342, %v396
      %v421 = vadd.f32 %v343, %v398
      %v422 = vadd.f32 %v345, %v401
      %v423 = vadd.f32 %v346, %v403
      %vm439 = vcmask 1045504
      %v440 = vrot.slane %v333, 2
      %v441 = vrot.slane %v334, 2
      %v442 = vsel %vm439, %v440, %v441
      %v443 = vrot.slane %v335, 2
      %v444 = vsel %vm439, %v441, %v443
      %v445 = vrot.slane %v336, 2
      %v446 = vrot.slane %v337, 2
      %v447 = vsel %vm439, %v445, %v446
      %v448 = vrot.slane %v338, 2
      %v449 = vsel %vm439, %v446, %v448
      %v450 = vrot.slane %v339, 2
      %v451 = vrot.slane %v340, 2
      %v452 = vsel %vm439, %v450, %v451
      %v453 = vrot.slane %v341, 2
      %v454 = vsel %vm439, %v451, %v453
      %v455 = vrot.slane %v342, 2
      %v456 = vrot.slane %v343, 2
      %v457 = vsel %vm439, %v455, %v456
      %v458 = vrot.slane %v344, 2
      %v459 = vsel %vm439, %v456, %v458
      %v460 = vrot.slane %v345, 2
      %v461 = vrot.slane %v346, 2
      %v462 = vsel %vm439, %v460, %v461
      %v463 = vrot.slane %v347, 2
      %v464 = vsel %vm439, %v461, %v463
      %v475 = vadd.f32 %v414, %v442
      %v476 = vadd.f32 %v415, %v444
      %v477 = vadd.f32 %v416, %v447
      %v478 = vadd.f32 %v417, %v449
      %v479 = vadd.f32 %v418, %v452
      %v480 = vadd.f32 %v419, %v454
      %v481 = vadd.f32 %v420, %v457
      %v482 = vadd.f32 %v421, %v459
      %v483 = vadd.f32 %v422, %v462
      %v484 = vadd.f32 %v423, %v464
      %495 = vrot.lane.b32.xlu0 %v475, 2
      %v496 = vpop.permute.xlu0 %495
      %497 = vrot.lane.b32.xlu0 %v476, 2
      %v498 = vpop.permute.xlu0 %497
      %499 = vrot.lane.b32.xlu0 %v477, 2
      %v500 = vpop.permute.xlu0 %499
      %501 = vrot.lane.b32.xlu0 %v478, 2
      %v502 = vpop.permute.xlu0 %501
      %503 = vrot.lane.b32.xlu0 %v479, 2
      %v504 = vpop.permute.xlu0 %503
      %505 = vrot.lane.b32.xlu0 %v480, 2
      %v506 = vpop.permute.xlu0 %505
      %507 = vrot.lane.b32.xlu0 %v481, 2
      %v508 = vpop.permute.xlu0 %507
      %509 = vrot.lane.b32.xlu0 %v482, 2
      %v510 = vpop.permute.xlu0 %509
      %511 = vrot.lane.b32.xlu0 %v483, 2
      %v512 = vpop.permute.xlu0 %511
      %513 = vrot.lane.b32.xlu0 %v484, 2
      %v514 = vpop.permute.xlu0 %513
      %v525 = vsub.f32 %v475, %v496
      %v526 = vsub.f32 %v476, %v498
      %v527 = vsub.f32 %v477, %v500
      %v528 = vsub.f32 %v478, %v502
      %v529 = vsub.f32 %v479, %v504
      %v530 = vsub.f32 %v480, %v506
      %v531 = vsub.f32 %v481, %v508
      %v532 = vsub.f32 %v482, %v510
      %v533 = vsub.f32 %v483, %v512
      %v534 = vsub.f32 %v484, %v514
      %535 = vrot.lane.b32.xlu0 %v348, 127
      %v536 = vpop.permute.xlu0 %535
      %537 = vrot.lane.b32.xlu0 %v349, 127
      %v538 = vpop.permute.xlu0 %537
      %539 = vrot.lane.b32.xlu0 %v350, 127
      %v540 = vpop.permute.xlu0 %539
      %541 = vrot.lane.b32.xlu0 %v351, 127
      %v542 = vpop.permute.xlu0 %541
      %543 = vrot.lane.b32.xlu0 %v352, 127
      %v544 = vpop.permute.xlu0 %543
      %545 = vrot.lane.b32.xlu0 %v353, 127
      %v546 = vpop.permute.xlu0 %545
      %547 = vrot.lane.b32.xlu0 %v354, 127
      %v548 = vpop.permute.xlu0 %547
      %549 = vrot.lane.b32.xlu0 %v355, 127
      %v550 = vpop.permute.xlu0 %549
      %551 = vrot.lane.b32.xlu0 %v356, 127
      %v552 = vpop.permute.xlu0 %551
      %553 = vrot.lane.b32.xlu0 %v357, 127
      %v554 = vpop.permute.xlu0 %553
      %555 = vrot.lane.b32.xlu0 %v358, 127
      %v556 = vpop.permute.xlu0 %555
      %557 = vrot.lane.b32.xlu0 %v359, 127
      %v558 = vpop.permute.xlu0 %557
      %559 = vrot.lane.b32.xlu0 %v360, 127
      %v560 = vpop.permute.xlu0 %559
      %561 = vrot.lane.b32.xlu0 %v361, 127
      %v562 = vpop.permute.xlu0 %561
      %563 = vrot.lane.b32.xlu0 %v362, 127
      %v564 = vpop.permute.xlu0 %563
      %v580 = vadd.f32 %v333, %v536
      %v581 = vadd.f32 %v334, %v538
      %v582 = vadd.f32 %v335, %v540
      %v583 = vadd.f32 %v336, %v542
      %v584 = vadd.f32 %v337, %v544
      %v585 = vadd.f32 %v338, %v546
      %v586 = vadd.f32 %v339, %v548
      %v587 = vadd.f32 %v340, %v550
      %v588 = vadd.f32 %v341, %v552
      %v589 = vadd.f32 %v342, %v554
      %v590 = vadd.f32 %v343, %v556
      %v591 = vadd.f32 %v344, %v558
      %v592 = vadd.f32 %v345, %v560
      %v593 = vadd.f32 %v346, %v562
      %v594 = vadd.f32 %v347, %v564
      %595 = vrot.lane.b32.xlu0 %v333, 126
      %v596 = vpop.permute.xlu0 %595
      %597 = vrot.lane.b32.xlu0 %v334, 126
      %v598 = vpop.permute.xlu0 %597
      %599 = vrot.lane.b32.xlu0 %v335, 126
      %v600 = vpop.permute.xlu0 %599
      %601 = vrot.lane.b32.xlu0 %v336, 126
      %v602 = vpop.permute.xlu0 %601
      %603 = vrot.lane.b32.xlu0 %v337, 126
      %v604 = vpop.permute.xlu0 %603
      %605 = vrot.lane.b32.xlu0 %v338, 126
      %v606 = vpop.permute.xlu0 %605
      %607 = vrot.lane.b32.xlu0 %v339, 126
      %v608 = vpop.permute.xlu0 %607
      %609 = vrot.lane.b32.xlu0 %v340, 126
      %v610 = vpop.permute.xlu0 %609
      %611 = vrot.lane.b32.xlu0 %v341, 126
      %v612 = vpop.permute.xlu0 %611
      %613 = vrot.lane.b32.xlu0 %v342, 126
      %v614 = vpop.permute.xlu0 %613
      %615 = vrot.lane.b32.xlu0 %v343, 126
      %v616 = vpop.permute.xlu0 %615
      %617 = vrot.lane.b32.xlu0 %v344, 126
      %v618 = vpop.permute.xlu0 %617
      %619 = vrot.lane.b32.xlu0 %v345, 126
      %v620 = vpop.permute.xlu0 %619
      %621 = vrot.lane.b32.xlu0 %v346, 126
      %v622 = vpop.permute.xlu0 %621
      %623 = vrot.lane.b32.xlu0 %v347, 126
      %v624 = vpop.permute.xlu0 %623
      %v640 = vadd.f32 %v580, %v596
      %v641 = vadd.f32 %v581, %v598
      %v642 = vadd.f32 %v582, %v600
      %v643 = vadd.f32 %v583, %v602
      %v644 = vadd.f32 %v584, %v604
      %v645 = vadd.f32 %v585, %v606
      %v646 = vadd.f32 %v586, %v608
      %v647 = vadd.f32 %v587, %v610
      %v648 = vadd.f32 %v588, %v612
      %v649 = vadd.f32 %v589, %v614
      %v650 = vadd.f32 %v590, %v616
      %v651 = vadd.f32 %v591, %v618
      %v652 = vadd.f32 %v592, %v620
      %v653 = vadd.f32 %v593, %v622
      %v654 = vadd.f32 %v594, %v624
      %vm665 = vcmask 1041408
      %v666 = vrot.slane %v640, 6
      %v667 = vrot.slane %v641, 6
      %v668 = vsel %vm665, %v666, %v667
      %v669 = vrot.slane %v643, 6
      %v670 = vrot.slane %v644, 6
      %v671 = vsel %vm665, %v669, %v670
      %v672 = vrot.slane %v646, 6
      %v673 = vrot.slane %v647, 6
      %v674 = vsel %vm665, %v672, %v673
      %v675 = vrot.slane %v649, 6
      %v676 = vrot.slane %v650, 6
      %v677 = vsel %vm665, %v675, %v676
      %v678 = vrot.slane %v652, 6
      %v679 = vrot.slane %v653, 6
      %v680 = vsel %vm665, %v678, %v679
      %v696 = vsub.f32 %v640, %v666
      %v697 = vsub.f32 %v641, %v668
      %v698 = vsub.f32 %v642, %v667
      %v699 = vsub.f32 %v643, %v669
      %v700 = vsub.f32 %v644, %v671
      %v701 = vsub.f32 %v645, %v670
      %v702 = vsub.f32 %v646, %v672
      %v703 = vsub.f32 %v647, %v674
      %v704 = vsub.f32 %v648, %v673
      %v705 = vsub.f32 %v649, %v675
      %v706 = vsub.f32 %v650, %v677
      %v707 = vsub.f32 %v651, %v676
      %v708 = vsub.f32 %v652, %v678
      %v709 = vsub.f32 %v653, %v680
      %v710 = vsub.f32 %v654, %v679
      %v711 = vand.u32 2147483647, %v525
      %v712 = vand.u32 2147483647, %v526
      %v713 = vand.u32 2147483647, %v527
      %v714 = vand.u32 2147483647, %v528
      %v715 = vand.u32 2147483647, %v529
      %v716 = vand.u32 2147483647, %v530
      %v717 = vand.u32 2147483647, %v531
      %v718 = vand.u32 2147483647, %v532
      %v719 = vand.u32 2147483647, %v533
      %v720 = vand.u32 2147483647, %v534
      %v721 = vand.u32 2147483647, %v696
      %v722 = vand.u32 2147483647, %v697
      %v723 = vand.u32 2147483647, %v698
      %v724 = vand.u32 2147483647, %v699
      %v725 = vand.u32 2147483647, %v700
      %v726 = vand.u32 2147483647, %v701
      %v727 = vand.u32 2147483647, %v702
      %v728 = vand.u32 2147483647, %v703
      %v729 = vand.u32 2147483647, %v704
      %v730 = vand.u32 2147483647, %v705
      %v731 = vand.u32 2147483647, %v706
      %v732 = vand.u32 2147483647, %v707
      %v733 = vand.u32 2147483647, %v708
      %v734 = vand.u32 2147483647, %v709
      %v735 = vand.u32 2147483647, %v710
      %v751 = vrot.slane %v721, 2
      %v752 = vrot.slane %v722, 2
      %v753 = vsel %vm439, %v751, %v752
      %v754 = vrot.slane %v723, 2
      %v755 = vsel %vm439, %v752, %v754
      %v756 = vrot.slane %v724, 2
      %v757 = vrot.slane %v725, 2
      %v758 = vsel %vm439, %v756, %v757
      %v759 = vrot.slane %v726, 2
      %v760 = vsel %vm439, %v757, %v759
      %v761 = vrot.slane %v727, 2
      %v762 = vrot.slane %v728, 2
      %v763 = vsel %vm439, %v761, %v762
      %v764 = vrot.slane %v729, 2
      %v765 = vsel %vm439, %v762, %v764
      %v766 = vrot.slane %v730, 2
      %v767 = vrot.slane %v731, 2
      %v768 = vsel %vm439, %v766, %v767
      %v769 = vrot.slane %v732, 2
      %v770 = vsel %vm439, %v767, %v769
      %v771 = vrot.slane %v733, 2
      %v772 = vrot.slane %v734, 2
      %v773 = vsel %vm439, %v771, %v772
      %v774 = vrot.slane %v735, 2
      %v775 = vsel %vm439, %v772, %v774
      %776 = vrot.lane.b32.xlu0 %v753, 2
      %v777 = vpop.permute.xlu0 %776
      %778 = vrot.lane.b32.xlu0 %v755, 2
      %v779 = vpop.permute.xlu0 %778
      %780 = vrot.lane.b32.xlu0 %v758, 2
      %v781 = vpop.permute.xlu0 %780
      %782 = vrot.lane.b32.xlu0 %v760, 2
      %v783 = vpop.permute.xlu0 %782
      %784 = vrot.lane.b32.xlu0 %v763, 2
      %v785 = vpop.permute.xlu0 %784
      %786 = vrot.lane.b32.xlu0 %v765, 2
      %v787 = vpop.permute.xlu0 %786
      %788 = vrot.lane.b32.xlu0 %v768, 2
      %v789 = vpop.permute.xlu0 %788
      %790 = vrot.lane.b32.xlu0 %v770, 2
      %v791 = vpop.permute.xlu0 %790
      %792 = vrot.lane.b32.xlu0 %v773, 2
      %v793 = vpop.permute.xlu0 %792
      %794 = vrot.lane.b32.xlu0 %v775, 2
      %v795 = vpop.permute.xlu0 %794
      %v806 = vadd.f32 %v711, %v777
      %v807 = vadd.f32 %v712, %v779
      %v808 = vadd.f32 %v713, %v781
      %v809 = vadd.f32 %v714, %v783
      %v810 = vadd.f32 %v715, %v785
      %v811 = vadd.f32 %v716, %v787
      %v812 = vadd.f32 %v717, %v789
      %v813 = vadd.f32 %v718, %v791
      %v814 = vadd.f32 %v719, %v793
      %v815 = vadd.f32 %v720, %v795
      %826 = vrot.lane.b32.xlu0 %v125, 2
      %v827 = vpop.permute.xlu0 %826
      %828 = vrot.lane.b32.xlu0 %v126, 2
      %v829 = vpop.permute.xlu0 %828
      %830 = vrot.lane.b32.xlu0 %v127, 2
      %v831 = vpop.permute.xlu0 %830
      %832 = vrot.lane.b32.xlu0 %v128, 2
      %v833 = vpop.permute.xlu0 %832
      %834 = vrot.lane.b32.xlu0 %v129, 2
      %v835 = vpop.permute.xlu0 %834
      %836 = vrot.lane.b32.xlu0 %v130, 2
      %v837 = vpop.permute.xlu0 %836
      %838 = vrot.lane.b32.xlu0 %v131, 2
      %v839 = vpop.permute.xlu0 %838
      %840 = vrot.lane.b32.xlu0 %v132, 2
      %v841 = vpop.permute.xlu0 %840
      %842 = vrot.lane.b32.xlu0 %v133, 2
      %v843 = vpop.permute.xlu0 %842
      %844 = vrot.lane.b32.xlu0 %v134, 2
      %v845 = vpop.permute.xlu0 %844
      %v856 = vmul.f32 %v806, %v827
      %v857 = vmul.f32 %v807, %v829
      %v858 = vmul.f32 %v808, %v831
      %v859 = vmul.f32 %v809, %v833
      %v860 = vmul.f32 %v810, %v835
      %v861 = vmul.f32 %v811, %v837
      %v862 = vmul.f32 %v812, %v839
      %v863 = vmul.f32 %v813, %v841
      %v864 = vmul.f32 %v814, %v843
      %v865 = vmul.f32 %v815, %v845
      %v866 = vld [vmem:[#allocation8] sm:$0xff]
      %v867 = vld [vmem:[#allocation8 + $0x8] sm:$0xff]
      %vm868 = vcmask 130048
      %v869 = vsel %vm868, %v145, 0.0
      %v870 = vsel %vm868, %v147, 0.0
      %v871 = vadd.f32 %v869, %v870
      %v872 = vsel %vm868, %v149, 0.0
      %v873 = vadd.f32 %v871, %v872
      %v874 = vsel %vm868, %v151, 0.0
      %v875 = vadd.f32 %v873, %v874
      %v876 = vsel %vm868, %v153, 0.0
      %v877 = vadd.f32 %v875, %v876
      %v878 = vsel %vm868, %v146, 0.0
      %v879 = vsel %vm868, %v148, 0.0
      %v880 = vadd.f32 %v878, %v879
      %v881 = vsel %vm868, %v150, 0.0
      %v882 = vadd.f32 %v880, %v881
      %v883 = vsel %vm868, %v152, 0.0
      %v884 = vadd.f32 %v882, %v883
      %v885 = vsel %vm868, %v154, 0.0
      %v886 = vadd.f32 %v884, %v885
      %v887 = vadd.f32 %v866, %v877
      %v888 = vadd.f32 %v867, %v886
      %889 = vst.msk [vmem:[#allocation8] sm:$0xff] %vm868, %v887
      %890 = vst.msk [vmem:[#allocation8 + $0x8] sm:$0xff] %vm868, %v888
      %s891 = scalar_lea.vmem [#allocation8], 16
      %v892 = vld [vmem:[%s891] sm:$0xff]
      %v893 = vld [vmem:[%s891 + $0x8] sm:$0xff]
      %vm894 = vcmask 146448
      %v895 = vsel %vm894, %v806, 0.0
      %v896 = vsel %vm894, %v808, 0.0
      %v897 = vadd.f32 %v895, %v896
      %v898 = vsel %vm894, %v810, 0.0
      %v899 = vadd.f32 %v897, %v898
      %v900 = vsel %vm894, %v812, 0.0
      %v901 = vadd.f32 %v899, %v900
      %v902 = vsel %vm894, %v814, 0.0
      %v903 = vadd.f32 %v901, %v902
      %v904 = vsel %vm894, %v807, 0.0
      %v905 = vsel %vm894, %v809, 0.0
      %v906 = vadd.f32 %v904, %v905
      %v907 = vsel %vm894, %v811, 0.0
      %v908 = vadd.f32 %v906, %v907
      %v909 = vsel %vm894, %v813, 0.0
      %v910 = vadd.f32 %v908, %v909
      %v911 = vsel %vm894, %v815, 0.0
      %v912 = vadd.f32 %v910, %v911
      %915 = vrot.lane.b32.xlu0 %v903, 126
      %v916 = vpop.permute.xlu0 %915
      %917 = vrot.lane.b32.xlu0 %v912, 126
      %v918 = vpop.permute.xlu0 %917
      %v921 = vadd.f32 %v892, %v916
      %v922 = vadd.f32 %v893, %v918
      %923 = vst.msk [vmem:[%s891] sm:$0xff] %vm868, %v921
      %924 = vst.msk [vmem:[%s891 + $0x8] sm:$0xff] %vm868, %v922
      %s925 = scalar_lea.vmem [#allocation8], 32
      %v926 = vld [vmem:[%s925] sm:$0xff]
      %v927 = vld [vmem:[%s925 + $0x8] sm:$0xff]
      %v928 = vsel %vm894, %v856, 0.0
      %v929 = vsel %vm894, %v858, 0.0
      %v930 = vadd.f32 %v928, %v929
      %v931 = vsel %vm894, %v860, 0.0
      %v932 = vadd.f32 %v930, %v931
      %v933 = vsel %vm894, %v862, 0.0
      %v934 = vadd.f32 %v932, %v933
      %v935 = vsel %vm894, %v864, 0.0
      %v936 = vadd.f32 %v934, %v935
      %v937 = vsel %vm894, %v857, 0.0
      %v938 = vsel %vm894, %v859, 0.0
      %v939 = vadd.f32 %v937, %v938
      %v940 = vsel %vm894, %v861, 0.0
      %v941 = vadd.f32 %v939, %v940
      %v942 = vsel %vm894, %v863, 0.0
      %v943 = vadd.f32 %v941, %v942
      %v944 = vsel %vm894, %v865, 0.0
      %v945 = vadd.f32 %v943, %v944
      %948 = vrot.lane.b32.xlu0 %v936, 126
      %v949 = vpop.permute.xlu0 %948
      %950 = vrot.lane.b32.xlu0 %v945, 126
      %v951 = vpop.permute.xlu0 %950
      %v954 = vadd.f32 %v926, %v949
      %v955 = vadd.f32 %v927, %v951
      %956 = vst.msk [vmem:[%s925] sm:$0xff] %vm868, %v954
      %957 = vst.msk [vmem:[%s925 + $0x8] sm:$0xff] %vm868, %v955
    $region33: #{tpu_custom_call.1} parent=1 // pred_fallthru
      _
    // Predicated region
    $region34: #{tpu_custom_call.1} parent=1 // pred_check
      _
    $region35: #{tpu_custom_call.1} parent=1 // pred_check_branch
      %959 = sbr.rel (0) target = $region37
    $region36: #{tpu_custom_call.1} parent=1 // pred_region
      %s961 = ssub.s32 768, 768
      %962 = vsyncadd [#allocation4], %s961
      %s963 = sshll.u32 [#allocation8], 4
      %s964 = int_to_ptr.vmem [resolvable:$true] %s963
      %969 = dma.vmem_to_hbm [thread:$0]  %s964, 768, %s3, [#allocation4], 128, 128, 8
    $region37: #{tpu_custom_call.1} parent=1 // pred_fallthru
      _
    // Predicated region
    $region38: #{tpu_custom_call.1} parent=1 // pred_check
      _
    $region39: #{tpu_custom_call.1} parent=1 // pred_check_branch
      %971 = sbr.rel (0) target = $region41
    $region40: #{tpu_custom_call.1} parent=1 // pred_region
      %972 = dma.done [#allocation4], 768
    $region41: #{tpu_custom_call.1} parent=1 // pred_fallthru
      _
    %973 = vsyncpa [#allocation3], 1
    %974 = vsyncpa [#allocation6], 1
    %975 = vsyncpa [#allocation4], 1

</llo_original>
